<compile_context>
chip_gen: v5e
topology: v5e:2x2
jax: 0.10.0
libtpu: 0.0.40
codegen_flags: <defaults>
</compile_context>

<pallas_src>
import functools

import jax
import jax.numpy as jnp
from jax.experimental import pallas as pl
from jax.experimental.pallas import tpu as pltpu


def _round_up(a, b):
    return ((a + b - 1) // b) * b


def _instance_norm_kernel(x_ref, o_ref, *, epsilon, inv_hw):
    # Block shape: (R, HW). One row == one (n, c) instance.
    x = x_ref[...].astype(jnp.float32)
    mu = jnp.sum(x, axis=-1, keepdims=True) * inv_hw          # E[x]
    xc = x - mu
    var = jnp.sum(xc * xc, axis=-1, keepdims=True) * inv_hw   # E[(x-mu)^2] (two-pass, matches ref)
    inv = jax.lax.rsqrt(var + epsilon)                        # EUP, cheap
    o_ref[...] = (xc * inv).astype(o_ref.dtype)


def _vmem_budget():
    """Per-generation tile / VMEM-limit choices."""
    try:
        cap = pltpu.get_tpu_info().vmem_capacity_bytes
    except Exception:
        cap = 64 * 1024 * 1024  # conservative fallback (v7x-sized)
    if cap >= 128 * 1024 * 1024:          # v5e / v6e
        target_tile_bytes = 8 * 1024 * 1024
        vmem_limit = 96 * 1024 * 1024
    else:                                  # v7x (64 MiB per TensorCore)
        target_tile_bytes = 4 * 1024 * 1024
        vmem_limit = min(48 * 1024 * 1024, (cap * 3) // 4)
    return target_tile_bytes, vmem_limit


def instance_norm(x, epsilon=1e-8):
    """x: (N, C, H, W). Per-(n, c) normalization over spatial dims, matching the
    reference PyTorch InstanceNorm module (no affine params, eps=1e-8)."""
    N, C, H, W = x.shape
    rows = N * C
    hw = H * W

    x2 = x.reshape(rows, hw)  # free reshape for contiguous NCHW

    target_tile_bytes, vmem_limit = _vmem_budget()

    # Real VMEM footprint per row (physical lanes pad to 128):
    #   2x input DMA buf + 2x output DMA buf at x.dtype, plus ~3 f32 intermediates.
    hw_phys = _round_up(hw, 128)
    itemsize = jnp.dtype(x.dtype).itemsize
    bytes_per_row_total = hw_phys * (4 * itemsize + 3 * 4)
    bytes_per_row_buf = hw_phys * itemsize

    r_from_tile = target_tile_bytes // max(bytes_per_row_buf, 1)
    r_from_vmem = (vmem_limit * 7 // 8) // max(bytes_per_row_total, 1)
    r_cap = max(16, (min(r_from_tile, r_from_vmem) // 16) * 16)

    if rows > r_cap:
        R = r_cap
    elif rows >= 32:
        # Whole workload fits one block: split so the parallel axis has >=2 programs.
        R = _round_up((rows + 1) // 2, 16)
        if R >= rows:
            R = rows
    else:
        R = rows  # block dim equals full array dim -> exempt from sublane rule

    grid = (pl.cdiv(rows, R),)

    kernel = functools.partial(
        _instance_norm_kernel, epsilon=float(epsilon), inv_hw=1.0 / float(hw)
    )

    out2 = pl.pallas_call(
        kernel,
        out_shape=jax.ShapeDtypeStruct((rows, hw), x.dtype),
        grid_spec=pltpu.PrefetchScalarGridSpec(
            num_scalar_prefetch=0,
            grid=grid,
            in_specs=[pl.BlockSpec((R, hw), lambda i: (i, 0))],
            out_specs=pl.BlockSpec((R, hw), lambda i: (i, 0)),
        ),
        compiler_params=pltpu.CompilerParams(
            dimension_semantics=("parallel",),
            vmem_limit_bytes=vmem_limit,
        ),
    )(x2)

    return out2.reshape(N, C, H, W)


def _reference_instance_norm(x, epsilon=1e-8):
    x = x.astype(jnp.float32)
    xc = x - jnp.mean(x, axis=(2, 3), keepdims=True)
    inv = jax.lax.rsqrt(jnp.mean(xc * xc, axis=(2, 3), keepdims=True) + epsilon)
    return xc * inv


if __name__ == "__main__":
    key = jax.random.PRNGKey(0)

    # Primary test: matches the module's conv-style NCHW usage.
    N, C, H, W = 2, 4, 16, 16
    x = jax.random.normal(key, (N, C, H, W), dtype=jnp.float32)
    out = jax.block_until_ready(instance_norm(x, epsilon=1e-8))
    ref = _reference_instance_norm(x, epsilon=1e-8)
    assert out.shape == (N, C, H, W)
    assert jnp.allclose(out, ref, atol=1e-5, rtol=1e-5)

    # Secondary test: ragged last dim (H*W % 128 != 0) handled without any padding pass.
    k2 = jax.random.PRNGKey(1)
    x2 = jax.random.normal(k2, (2, 3, 10, 12), dtype=jnp.float32) * 3.0 + 1.5
    out2 = jax.block_until_ready(instance_norm(x2, epsilon=1e-8))
    ref2 = _reference_instance_norm(x2, epsilon=1e-8)
    assert out2.shape == x2.shape
    assert jnp.allclose(out2, ref2, atol=1e-5, rtol=1e-5)

    # Tertiary test: many rows (exercises multi-block grid + partial last row block).
    k3 = jax.random.PRNGKey(2)
    x3 = jax.random.normal(k3, (5, 7, 16, 16), dtype=jnp.float32)  # rows=35, not /16
    out3 = jax.block_until_ready(instance_norm(x3, epsilon=1e-8))
    ref3 = _reference_instance_norm(x3, epsilon=1e-8)
    assert jnp.allclose(out3, ref3, atol=1e-5, rtol=1e-5)

    print("KERNEL_OK")
</pallas_src>

<mosaic_0001>
module attributes {stable_mosaic.version = 11 : i64} {
  func.func @_instance_norm_kernel(%arg0: i32, %arg1: memref<8x256xf32, #tpu.memory_space<vmem>>, %arg2: memref<8x256xf32, #tpu.memory_space<vmem>>) attributes {dimension_semantics = [#tpu.dimension_semantics<parallel>], iteration_bounds = array<i64: 1>, scalar_prefetch = 0 : i64, scratch_operands = 0 : i64, tpu.core_type = #tpu.core_type<tc>, window_params = [{transform_indices = @transform_0, window_bounds = array<i64: 8, 256>}, {transform_indices = @transform_1, window_bounds = array<i64: 8, 256>}]} {
    %c0 = arith.constant 0 : index
    %c0_0 = arith.constant 0 : index
    %0 = vector.load %arg1[%c0, %c0_0] : memref<8x256xf32, #tpu.memory_space<vmem>>, vector<8x256xf32>
    %cst = arith.constant dense<0.000000e+00> : vector<8xf32>
    %1 = vector.multi_reduction <add>, %0, %cst [1] : vector<8x256xf32> to vector<8xf32>
    %2 = vector.shape_cast %1 : vector<8xf32> to vector<8x1xf32>
    %cst_1 = arith.constant 3.906250e-03 : f32
    %3 = vector.broadcast %cst_1 : f32 to vector<8x1xf32>
    %4 = arith.mulf %2, %3 : vector<8x1xf32>
    %5 = vector.broadcast %4 : vector<8x1xf32> to vector<8x256xf32>
    %6 = arith.subf %0, %5 : vector<8x256xf32>
    %7 = arith.mulf %6, %6 : vector<8x256xf32>
    %cst_2 = arith.constant dense<0.000000e+00> : vector<8xf32>
    %8 = vector.multi_reduction <add>, %7, %cst_2 [1] : vector<8x256xf32> to vector<8xf32>
    %9 = vector.shape_cast %8 : vector<8xf32> to vector<8x1xf32>
    %cst_3 = arith.constant 3.906250e-03 : f32
    %10 = vector.broadcast %cst_3 : f32 to vector<8x1xf32>
    %11 = arith.mulf %9, %10 : vector<8x1xf32>
    %cst_4 = arith.constant 9.99999993E-9 : f32
    %12 = vector.broadcast %cst_4 : f32 to vector<8x1xf32>
    %13 = arith.addf %11, %12 : vector<8x1xf32>
    %14 = math.rsqrt %13 : vector<8x1xf32>
    %15 = vector.broadcast %14 : vector<8x1xf32> to vector<8x256xf32>
    %16 = arith.mulf %6, %15 : vector<8x256xf32>
    %c0_5 = arith.constant 0 : index
    %c0_6 = arith.constant 0 : index
    %17 = vector.load %arg2[%c0_5, %c0_6] : memref<8x256xf32, #tpu.memory_space<vmem>>, vector<8x256xf32>
    tpu.vector_store %arg2[%c0_5, %c0_6], %16 {strides = array<i32>} : memref<8x256xf32, #tpu.memory_space<vmem>>, vector<8x256xf32>,
    return
  }
  func.func @transform_0(%arg0: i32) -> (i32, i32) {
    %c0_i32 = arith.constant 0 : i32
    %c0_i32_0 = arith.constant 0 : i32
    return %arg0, %c0_i32 : i32, i32
  }
  func.func @transform_1(%arg0: i32) -> (i32, i32) {
    %c0_i32 = arith.constant 0 : i32
    %c0_i32_0 = arith.constant 0 : i32
    return %arg0, %c0_i32 : i32, i32
  }
}

</mosaic_0001>

<llo_original>
// kernel: tpu_custom_call.1
$region0: #{tpu_custom_call.1}
  #allocation0 [shape = 'u32[]', space=smem, size = 0x4, offset = 0x4, fixed_abs, tag = 'smem constant byte address 0x4 - core index']
  #allocation1 [shape = 'u32[72,128]{1,0:T(1,128)}', space=vmem, size = 0x9000, scoped, tag = 'internal scratch']
  %s0 = inlined_call_operand.hbm [shape: f32[8,256], index: 0, kind: input, shape index: {}]
  %s1 = inlined_call_operand.hbm [shape: f32[8,256], index: 1, kind: output, shape index: {}]
  %s2 = sld [smem:[#allocation0]]
  $region18: #{tpu_custom_call.1} parent=0
    _
  %s4 = ssub.s32 1, %s2
  %s5 = scalar_select 0, %s4, %s2
  $region1: #{tpu_custom_call.1} parent=0
    #allocation2 [shape = 'u8[8192]{0}', space=vmem, size = 0x2000, scoped, tag = 'input window, operand 0, single buffered']
    #allocation3 [shape = 's32[1]{0}', space=sflag, size = 0x4, scoped, tag = 'scoped memory for tpu_custom_call.1']
    #allocation4 [shape = 's32[1]{0}', space=sflag, size = 0x4, scoped, tag = 'scoped memory for tpu_custom_call.1']
    #allocation5 [shape = 'u8[8192]{0}', space=vmem, size = 0x2000, scoped, tag = 'output window, operand 0, single buffered']
    %6 = vsyncpa [#allocation3], 0
    %7 = vsyncpa [#allocation4], 0
    // Predicated region
    $region2: #{tpu_custom_call.1} parent=1 // pred_check
      _
    $region3: #{tpu_custom_call.1} parent=1 // pred_check_branch
      %9 = sbr.rel (0) target = $region5
    $region4: #{tpu_custom_call.1} parent=1 // pred_region
      %11 = vsyncadd [#allocation3], 0
      %s13 = sshll.u32 %s0, 4
      %s14 = int_to_ptr.hbm [resolvable:$true] %s13
      %s15 = sshll.u32 [#allocation2], 4
      %s16 = int_to_ptr.vmem [resolvable:$true] %s15
      %18 = dma.hbm_to_vmem [thread:$0]  %s14, 256, %s16, [#allocation3]
    $region5: #{tpu_custom_call.1} parent=1 // pred_fallthru
      _
    // Predicated region
    $region6: #{tpu_custom_call.1} parent=1 // pred_check
      _
    $region7: #{tpu_custom_call.1} parent=1 // pred_check_branch
      %20 = sbr.rel (0) target = $region9
    $region8: #{tpu_custom_call.1} parent=1 // pred_region
      %22 = dma.done [#allocation3], 256
    $region9: #{tpu_custom_call.1} parent=1 // pred_fallthru
      _
    %v23 = vld [vmem:[#allocation2] sm:$0xff]
    %v24 = vld [vmem:[#allocation2 + $0x8] sm:$0xff]
    %v25 = vadd.f32 %v23, %v24
    %26 = vadd.xlane.f32.xlu0 %v25
    %v27 = vpop.xlane.xlu0 %26
    %v28 = vmul.f32 %v27, 0.00390625
    %v29 = vsub.f32 %v23, %v28
    %v30 = vsub.f32 %v24, %v28
    %v31 = vmul.f32 %v29, %v29
    %v32 = vmul.f32 %v30, %v30
    %v33 = vadd.f32 %v31, %v32
    %34 = vadd.xlane.f32.xlu0 %v33
    %v35 = vpop.xlane.xlu0 %34
    %v36 = vmul.f32 %v35, 0.00390625
    %v37 = vadd.f32 %v36, 1e-08
    %v38 = vrsqrt.pop %v37
    %v39 = vmul.f32 %v38, %v37
    %v40 = vmul.f32 %v39, %v38
    %v41 = vmul.f32 0.5, %v40
    %v42 = vsub.f32 1.5, %v41
    %v43 = vmul.f32 %v38, %v42
    %vm44 = vweird.f32 %v37
    %vm45 = vweird.f32 %v38
    %vm46 = vmor %vm44, %vm45
    %v47 = vsel %vm46, %v38, %v43
    %v48 = vmul.f32 %v29, %v47
    %v49 = vmul.f32 %v30, %v47
    %50 = vst [vmem:[#allocation5] sm:$0xff] %v48
    %51 = vst [vmem:[#allocation5 + $0x8] sm:$0xff] %v49
    // Predicated region
    $region10: #{tpu_custom_call.1} parent=1 // pred_check
      _
    $region11: #{tpu_custom_call.1} parent=1 // pred_check_branch
      %53 = sbr.rel (0) target = $region13
    $region12: #{tpu_custom_call.1} parent=1 // pred_region
      %55 = vsyncadd [#allocation4], 0
      %s57 = sshll.u32 [#allocation5], 4
      %s58 = int_to_ptr.vmem [resolvable:$true] %s57
      %s59 = sshll.u32 %s1, 4
      %s60 = int_to_ptr.hbm [resolvable:$true] %s59
      %62 = dma.vmem_to_hbm [thread:$0]  %s58, 256, %s60, [#allocation4]
    $region13: #{tpu_custom_call.1} parent=1 // pred_fallthru
      _
    // Predicated region
    $region14: #{tpu_custom_call.1} parent=1 // pred_check
      _
    $region15: #{tpu_custom_call.1} parent=1 // pred_check_branch
      %64 = sbr.rel (0) target = $region17
    $region16: #{tpu_custom_call.1} parent=1 // pred_region
      %66 = dma.done [#allocation4], 256
    $region17: #{tpu_custom_call.1} parent=1 // pred_fallthru
      _
    %67 = vsyncpa [#allocation3], 1
    %68 = vsyncpa [#allocation4], 1

</llo_original>
